<compile_context>
chip_gen: v7x
topology: tpu7x:2x2x1
jax: 0.10.0
libtpu: 0.0.40
codegen_flags: <defaults>
</compile_context>

<pallas_src>
import jax
import jax.numpy as jnp
import numpy as np
from jax.experimental import pallas as pl
from jax.experimental.pallas import tpu as pltpu


def _pairwise_span_kernel(bounds_ref, pooled_ref, out_ref):
    """One grid step processes BB batch rows.

    bounds_ref: (BB, 2*R, 1) int32.  Rows [0, R) are span lefts, rows [R, 2R)
        are span rights.  Within each half: row 0 is the anaphor span, rows
        [A, A+P) are the candidate spans, every other row is a zero-length
        span (left == right == 0) used only for sublane alignment.
    pooled_ref: (BB, S, Dh) float — feature-max-pooled token embeddings.
    out_ref:    (BB, Ppad, 2*Dh)  — [anaphor_sum ; candidate_sum] per pair.
    """
    BB, S, Dh = pooled_ref.shape
    R = bounds_ref.shape[1] // 2
    Ppad = out_ref.shape[1]
    A = R - Ppad                              # anaphor block rows at the top

    lefts = bounds_ref[:, 0:R, :]             # (BB, R, 1)
    rights = bounds_ref[:, R:2 * R, :]        # (BB, R, 1)

    # 0/1 span masks from an iota compare (VPU work, hidden under the DMA).
    tok = jax.lax.broadcasted_iota(jnp.int32, (R, S), 1)            # (R, S)
    mask = (tok[None, :, :] >= lefts) & (tok[None, :, :] < rights)  # (BB, R, S)
    mask = mask.astype(jnp.float32)

    # All span sums for all BB rows in one batched MXU matmul.
    spans = jnp.einsum(
        "brs,bsd->brd",
        mask,
        pooled_ref[...].astype(jnp.float32),
        preferred_element_type=jnp.float32,
        precision=jax.lax.Precision.HIGHEST,  # exact f32 span sums
    )                                                               # (BB, R, Dh)

    # First half of every pair row = the (single) anaphor sum, broadcast over
    # the candidate rows; second half = the candidate sums.  Both stores are
    # lane-dense and full width.
    ana = spans[:, 0:1, :]                                          # (BB, 1, Dh)
    out_ref[:, :, 0:Dh] = jnp.broadcast_to(ana, (BB, Ppad, Dh)).astype(out_ref.dtype)
    out_ref[:, :, Dh:2 * Dh] = spans[:, A:A + Ppad, :].astype(out_ref.dtype)


def elmo_pairwise_forward(elmo_emb, ana_spans, pot_spans):
    """elmo_emb: (B, S, D) float; ana_spans: (B, 2) int; pot_spans: (B, P, 2) int.
    Returns (B, P, D): concat([anaphor_repr, candidate_repr]) per pair."""
    B, S, D = elmo_emb.shape
    P = pot_spans.shape[1]
    assert D % 2 == 0
    Dh = D // 2

    # Sublane granularity of the output tile (8 for 32-bit, 16 for 16-bit).
    sub = 8 if np.dtype(elmo_emb.dtype).itemsize >= 4 else 16
    Ppad = max(sub, ((P + sub - 1) // sub) * sub)
    A = sub                                    # anaphor block rows
    R = A + Ppad                               # total mask rows per batch row

    # MaxPool1d(kernel_size=2) over the feature axis.  Kept in the wrapper so
    # it can fuse into the ELMo producer's epilogue in the full model; only
    # the halved (B, S, Dh) stream then flows through HBM into the kernel.
    pooled = jnp.maximum(elmo_emb[:, :, 0::2], elmo_emb[:, :, 1::2])   # (B,S,Dh)
    # TODO(synk): on v6e/v7x a bfloat16 pooled stream halves HBM bytes again,
    # but it loosens the span-sum accuracy below the 1e-4 tolerance used here.

    ana = ana_spans.astype(jnp.int32)                                  # (B, 2)
    pot = pot_spans.astype(jnp.int32)                                  # (B, P, 2)

    # Span-bounds table: [anaphor, A-1 zero rows, P candidates, pad rows].
    rows = jnp.concatenate(
        [ana[:, None, :],
         jnp.zeros((B, A - 1, 2), jnp.int32),
         pot,
         jnp.zeros((B, Ppad - P, 2), jnp.int32)], axis=1)              # (B, R, 2)
    # Single merged input (one DMA per step): lefts stacked on top of rights.
    bounds = jnp.concatenate([rows[:, :, 0], rows[:, :, 1]], axis=1)[..., None]  # (B, 2R, 1)

    # Batch-block the grid so each step moves a multi-hundred-KB..MB block.
    target_block_bytes = 2 * 1024 * 1024
    BB = int(max(1, min(B, 8, target_block_bytes // max(1, S * Dh * 4))))
    Bpad = ((B + BB - 1) // BB) * BB
    if Bpad > B:
        pooled = jnp.concatenate(
            [pooled, jnp.zeros((Bpad - B, S, Dh), pooled.dtype)], axis=0)
        bounds = jnp.concatenate(
            [bounds, jnp.zeros((Bpad - B, 2 * R, 1), jnp.int32)], axis=0)

    grid_spec = pltpu.PrefetchScalarGridSpec(
        num_scalar_prefetch=0,
        grid=(Bpad // BB,),
        in_specs=[
            pl.BlockSpec((BB, 2 * R, 1), lambda b: (b, 0, 0)),
            pl.BlockSpec((BB, S, Dh), lambda b: (b, 0, 0)),
        ],
        out_specs=pl.BlockSpec((BB, Ppad, D), lambda b: (b, 0, 0)),
    )
    out_padded = pl.pallas_call(
        _pairwise_span_kernel,
        out_shape=jax.ShapeDtypeStruct((Bpad, Ppad, D), elmo_emb.dtype),
        grid_spec=grid_spec,
        # On v7x, switching the leading axis to pltpu.CORE_PARALLEL shards the
        # batch blocks across both TensorCores; "parallel" kept for portability.
        compiler_params=pltpu.CompilerParams(
            dimension_semantics=("parallel",)),
    )(bounds, pooled)

    # Single slice at the very end (a no-op copy when B, P are already aligned).
    return out_padded[:B, :P, :]


def _reference(elmo_emb, ana_spans, pot_spans):
    emb = np.asarray(elmo_emb, dtype=np.float32)
    ana_spans = np.asarray(ana_spans)
    pot_spans = np.asarray(pot_spans)
    B, S, D = emb.shape
    P = pot_spans.shape[1]
    pooled = np.maximum(emb[:, :, 0::2], emb[:, :, 1::2])   # MaxPool1d(2) per token
    out = np.zeros((B, P, D), np.float32)
    for b in range(B):
        al, ar = int(ana_spans[b, 0]), int(ana_spans[b, 1])
        ana_repr = pooled[b, al:ar].sum(axis=0)
        for p in range(P):
            pl_, pr = int(pot_spans[b, p, 0]), int(pot_spans[b, p, 1])
            pot_repr = pooled[b, pl_:pr].sum(axis=0)
            out[b, p] = np.concatenate([ana_repr, pot_repr], axis=0)
    return out


if __name__ == "__main__":
    # Small shapes standing in for (batch, seq, elmo_size=1024, num candidates).
    B, S, D, P = 2, 16, 256, 4

    key = jax.random.PRNGKey(0)
    k_emb, k_al, k_an, k_pl, k_pn = jax.random.split(key, 5)

    elmo_emb = jax.random.normal(k_emb, (B, S, D), dtype=jnp.float32)

    # Deterministic span indices [left, right) inside the context.
    a_left = jax.random.randint(k_al, (B,), 0, S - 4)
    a_len = jax.random.randint(k_an, (B,), 1, 5)
    ana_spans = jnp.stack([a_left, jnp.minimum(a_left + a_len, S)], axis=-1).astype(jnp.int32)

    p_left = jax.random.randint(k_pl, (B, P), 0, S - 4)
    p_len = jax.random.randint(k_pn, (B, P), 1, 5)
    pot_spans = jnp.stack([p_left, jnp.minimum(p_left + p_len, S)], axis=-1).astype(jnp.int32)

    out = elmo_pairwise_forward(elmo_emb, ana_spans, pot_spans)
    out = jax.block_until_ready(out)

    ref = _reference(elmo_emb, ana_spans, pot_spans)
    np.testing.assert_allclose(np.asarray(out), ref, rtol=1e-4, atol=1e-4)

    # TODO(synk): the ELMo character-CNN/biLSTM embedder and optional phrase-BERT
    # encoder are external pretrained models; their output embeddings are taken as
    # the kernel input.  Feature flags (distance/grammar/...) default to False,
    # and self.ffnn / dropout / sigmoid belong to predict(), not forward().
    print("KERNEL_OK")
</pallas_src>

<mosaic_0001>
module attributes {stable_mosaic.version = 11 : i64} {
  func.func @_pairwise_span_kernel(%arg0: i32, %arg1: memref<2x32x1xi32, #tpu.memory_space<vmem>>, %arg2: memref<2x16x128xf32, #tpu.memory_space<vmem>>, %arg3: memref<2x8x256xf32, #tpu.memory_space<vmem>>) attributes {dimension_semantics = [#tpu.dimension_semantics<parallel>], iteration_bounds = array<i64: 1>, scalar_prefetch = 0 : i64, scratch_operands = 0 : i64, tpu.core_type = #tpu.core_type<tc>, window_params = [{transform_indices = @transform_0, window_bounds = array<i64: 2, 32, 1>}, {transform_indices = @transform_1, window_bounds = array<i64: 2, 16, 128>}, {transform_indices = @transform_2, window_bounds = array<i64: 2, 8, 256>}]} {
    %c0 = arith.constant 0 : index
    %c0_0 = arith.constant 0 : index
    %c0_1 = arith.constant 0 : index
    %0 = vector.load %arg1[%c0, %c0_0, %c0_1] : memref<2x32x1xi32, #tpu.memory_space<vmem>>, vector<2x16x1xi32>
    %c0_2 = arith.constant 0 : index
    %c16 = arith.constant 16 : index
    %c0_3 = arith.constant 0 : index
    %1 = vector.load %arg1[%c0_2, %c16, %c0_3] : memref<2x32x1xi32, #tpu.memory_space<vmem>>, vector<2x16x1xi32>
    %2 = tpu.iota {dimensions = array<i32: 1>} : vector<16x16xi32>
    %3 = vector.shape_cast %2 : vector<16x16xi32> to vector<1x16x16xi32>
    %4 = vector.broadcast %3 : vector<1x16x16xi32> to vector<2x16x16xi32>
    %5 = vector.broadcast %0 : vector<2x16x1xi32> to vector<2x16x16xi32>
    %6 = arith.cmpi sge, %4, %5 : vector<2x16x16xi32>
    %7 = vector.shape_cast %2 : vector<16x16xi32> to vector<1x16x16xi32>
    %8 = vector.broadcast %7 : vector<1x16x16xi32> to vector<2x16x16xi32>
    %9 = vector.broadcast %1 : vector<2x16x1xi32> to vector<2x16x16xi32>
    %10 = arith.cmpi slt, %8, %9 : vector<2x16x16xi32>
    %11 = arith.andi %6, %10 : vector<2x16x16xi1>
    %12 = arith.extui %11 : vector<2x16x16xi1> to vector<2x16x16xi32>
    %13 = arith.sitofp %12 : vector<2x16x16xi32> to vector<2x16x16xf32>
    %c0_4 = arith.constant 0 : index
    %c0_5 = arith.constant 0 : index
    %c0_6 = arith.constant 0 : index
    %14 = vector.load %arg2[%c0_4, %c0_5, %c0_6] : memref<2x16x128xf32, #tpu.memory_space<vmem>>, vector<2x16x128xf32>
    "tpu.trace_start"() <{level = 10 : i32, message = "brs,bsd->brd"}> : () -> ()
    %cst = arith.constant dense<0.000000e+00> : vector<2x16x128xf32>
    %15 = tpu.matmul %13, %14, %cst {dimension_numbers = #tpu.dot_dimension_numbers<[2], [1], [1], [2], [0, 0, 0, 1, 1, 2], [0], [0]>, precision = #tpu.contract_precision<fp32>} : vector<2x16x16xf32>, vector<2x16x128xf32>, vector<2x16x128xf32> -> vector<2x16x128xf32>
    "tpu.trace_stop"() : () -> ()
    %16 = vector.extract_strided_slice %15 {offsets = [0, 0, 0], sizes = [2, 1, 128], strides = [1, 1, 1]} : vector<2x16x128xf32> to vector<2x1x128xf32>
    %17 = vector.shape_cast %16 : vector<2x1x128xf32> to vector<2x1x128xf32>
    %18 = vector.broadcast %17 : vector<2x1x128xf32> to vector<2x8x128xf32>
    %c0_7 = arith.constant 0 : index
    %c0_8 = arith.constant 0 : index
    %c0_9 = arith.constant 0 : index
    %19 = vector.load %arg3[%c0_7, %c0_8, %c0_9] : memref<2x8x256xf32, #tpu.memory_space<vmem>>, vector<2x8x128xf32>
    tpu.vector_store %arg3[%c0_7, %c0_8, %c0_9], %18 {strides = array<i32>} : memref<2x8x256xf32, #tpu.memory_space<vmem>>, vector<2x8x128xf32>,
    %20 = vector.extract_strided_slice %15 {offsets = [0, 8, 0], sizes = [2, 8, 128], strides = [1, 1, 1]} : vector<2x16x128xf32> to vector<2x8x128xf32>
    %c0_10 = arith.constant 0 : index
    %c0_11 = arith.constant 0 : index
    %c128 = arith.constant 128 : index
    %21 = vector.load %arg3[%c0_10, %c0_11, %c128] : memref<2x8x256xf32, #tpu.memory_space<vmem>>, vector<2x8x128xf32>
    tpu.vector_store %arg3[%c0_10, %c0_11, %c128], %20 {strides = array<i32>} : memref<2x8x256xf32, #tpu.memory_space<vmem>>, vector<2x8x128xf32>,
    return
  }
  func.func @transform_0(%arg0: i32) -> (i32, i32, i32) {
    %c0_i32 = arith.constant 0 : i32
    %c0_i32_0 = arith.constant 0 : i32
    %c0_i32_1 = arith.constant 0 : i32
    return %arg0, %c0_i32, %c0_i32_0 : i32, i32, i32
  }
  func.func @transform_1(%arg0: i32) -> (i32, i32, i32) {
    %c0_i32 = arith.constant 0 : i32
    %c0_i32_0 = arith.constant 0 : i32
    %c0_i32_1 = arith.constant 0 : i32
    return %arg0, %c0_i32, %c0_i32_0 : i32, i32, i32
  }
  func.func @transform_2(%arg0: i32) -> (i32, i32, i32) {
    %c0_i32 = arith.constant 0 : i32
    %c0_i32_0 = arith.constant 0 : i32
    %c0_i32_1 = arith.constant 0 : i32
    return %arg0, %c0_i32, %c0_i32_0 : i32, i32, i32
  }
}

</mosaic_0001>

<llo_original>
// kernel: tpu_custom_call.1
$region0: #{tpu_custom_call.1}
  #allocation0 [shape = 'u32[]', space=smem, size = 0x4, offset = 0x4, fixed_abs, tag = 'smem constant byte address 0x4 - core index']
  #allocation1 [shape = 'u32[144,128]{1,0:T(1,128)}', space=vmem, size = 0x12000, scoped, tag = 'internal scratch']
  %s0 = inlined_call_operand.vmem [shape: s32[2,32,1], index: 0, kind: input, shape index: {}]
  %s1 = inlined_call_operand.vmem [shape: f32[2,16,128], index: 1, kind: input, shape index: {}]
  %s2 = inlined_call_operand.hbm [shape: f32[2,8,256], index: 2, kind: output, shape index: {}]
  %s3 = sld [smem:[#allocation0]]
  $region18: #{tpu_custom_call.1} parent=0
    _
  %s5 = ssub.s32 1, %s3
  %s6 = scalar_select 0, %s5, %s3
  $region1: #{tpu_custom_call.1} parent=0
    #allocation2 [shape = 'u8[16384]{0}', space=vmem, size = 0x4000, scoped, tag = 'output window, operand 0, single buffered']
    #allocation3 [shape = 's32[1]{0}', space=sflag, size = 0x4, scoped, tag = 'scoped memory for tpu_custom_call.1']
    %7 = vsyncpa [#allocation3], 0
    // Predicated region
    $region2: #{tpu_custom_call.1} parent=1 // pred_check
      _
    $region3: #{tpu_custom_call.1} parent=1 // pred_check_branch
      %9 = sbr.rel (0) target = $region5
    $region4: #{tpu_custom_call.1} parent=1 // pred_region
      _
    $region5: #{tpu_custom_call.1} parent=1 // pred_fallthru
      _
    // Predicated region
    $region6: #{tpu_custom_call.1} parent=1 // pred_check
      _
    $region7: #{tpu_custom_call.1} parent=1 // pred_check_branch
      %11 = sbr.rel (0) target = $region9
    $region8: #{tpu_custom_call.1} parent=1 // pred_region
      _
    $region9: #{tpu_custom_call.1} parent=1 // pred_fallthru
      _
    %v12 = vld [vmem:[%s0] sm:$0xff]
    %v13 = vld [vmem:[%s0 + $0x8] sm:$0xff]
    %v14 = vld [vmem:[%s0 + $0x20] sm:$0xff]
    %v15 = vld [vmem:[%s0 + $0x28] sm:$0xff]
    %v16 = vld [vmem:[%s0 + $0x10] sm:$0xff]
    %v17 = vld [vmem:[%s0 + $0x18] sm:$0xff]
    %v18 = vld [vmem:[%s0 + $0x30] sm:$0xff]
    %v19 = vld [vmem:[%s0 + $0x38] sm:$0xff]
    %v20 = vlaneseq
    %v21 = vand.u32 %v20, 127
    %22 = vset.pattern.permute.xlu0 0
    %23 = vperm.xlu0 %22, %v12
    %v24 = vpop.permute.xlu0 %23
    %25 = vset.pattern.permute.xlu0 0
    %26 = vperm.xlu0 %25, %v13
    %v27 = vpop.permute.xlu0 %26
    %28 = vset.pattern.permute.xlu0 0
    %29 = vperm.xlu0 %28, %v14
    %v30 = vpop.permute.xlu0 %29
    %31 = vset.pattern.permute.xlu0 0
    %32 = vperm.xlu0 %31, %v15
    %v33 = vpop.permute.xlu0 %32
    %vm34 = vcmp.ge.s32.totalorder %v21, %v24
    %vm35 = vcmp.ge.s32.totalorder %v21, %v27
    %vm36 = vcmp.ge.s32.totalorder %v21, %v30
    %vm37 = vcmp.ge.s32.totalorder %v21, %v33
    %38 = vset.pattern.permute.xlu0 0
    %39 = vperm.xlu0 %38, %v16
    %v40 = vpop.permute.xlu0 %39
    %41 = vset.pattern.permute.xlu0 0
    %42 = vperm.xlu0 %41, %v17
    %v43 = vpop.permute.xlu0 %42
    %44 = vset.pattern.permute.xlu0 0
    %45 = vperm.xlu0 %44, %v18
    %v46 = vpop.permute.xlu0 %45
    %47 = vset.pattern.permute.xlu0 0
    %48 = vperm.xlu0 %47, %v19
    %v49 = vpop.permute.xlu0 %48
    %vm50 = vcmp.lt.s32.totalorder %v21, %v40
    %vm51 = vcmp.lt.s32.totalorder %v21, %v43
    %vm52 = vcmp.lt.s32.totalorder %v21, %v46
    %vm53 = vcmp.lt.s32.totalorder %v21, %v49
    %vm54 = vmand %vm34, %vm50
    %vm55 = vmand %vm35, %vm51
    %vm56 = vmand %vm36, %vm52
    %vm57 = vmand %vm37, %vm53
    %v58 = vsel %vm54, 1, 0
    %v59 = vsel %vm55, 1, 0
    %v60 = vsel %vm56, 1, 0
    %v61 = vsel %vm57, 1, 0
    %v62 = vcvt.s32.f32 %v58
    %v63 = vcvt.s32.f32 %v59
    %v64 = vcvt.s32.f32 %v60
    %v65 = vcvt.s32.f32 %v61
    %v66 = vld [vmem:[%s1] sm:$0xff]
    %v67 = vld [vmem:[%s1 + $0x8] sm:$0xff]
    %v68 = vld [vmem:[%s1 + $0x10] sm:$0xff]
    %v69 = vld [vmem:[%s1 + $0x18] sm:$0xff]
    %vm70 = vcmask 130048
    %v72 = vsel %vm70, %v62, 0
    %v75 = vsel %vm70, %v63, 0
    %77 = vmatprep.subr.mxu0 0.0
    %v78 = vand.u32 %v66, 4294901760
    %79 = vmatpush1.msra.mxu0 %v78
    %80 = vmatprep.subr.mxu0 0.0
    %v81 = vand.u32 %v67, 4294901760
    %82 = vmatpush1.msra.mxu0 %v81
    %83 = vmatprep.subr.mxu0 0.0
    %84 = vmatpush1.msra.mxu0 0.0
    %85 = vmatprep.subr.mxu0 0.0
    %86 = vmatpush1.msra.mxu0 0.0
    %87 = vmatprep.subr.mxu0 0.0
    %88 = vmatpush1.msra.mxu0 0.0
    %89 = vmatprep.subr.mxu0 0.0
    %90 = vmatpush1.msra.mxu0 0.0
    %91 = vmatprep.subr.mxu0 0.0
    %92 = vmatpush1.msra.mxu0 0.0
    %93 = vmatprep.subr.mxu0 0.0
    %94 = vmatpush1.msra.mxu0 0.0
    %95 = vmatprep.subr.mxu0 0.0
    %96 = vmatpush1.msra.mxu0 0.0
    %97 = vmatprep.subr.mxu0 0.0
    %98 = vmatpush1.msra.mxu0 0.0
    %99 = vmatprep.subr.mxu0 0.0
    %100 = vmatpush1.msra.mxu0 0.0
    %101 = vmatprep.subr.mxu0 0.0
    %102 = vmatpush1.msra.mxu0 0.0
    %103 = vmatprep.subr.mxu0 0.0
    %104 = vmatpush1.msra.mxu0 0.0
    %105 = vmatprep.subr.mxu0 0.0
    %106 = vmatpush1.msra.mxu0 0.0
    %107 = vmatprep.subr.mxu0 0.0
    %108 = vmatpush1.msra.mxu0 0.0
    %109 = vmatprep.subr.mxu0 0.0
    %110 = vmatpush1.msra.mxu0 0.0
    %111 = vmatprep.subr.mxu0 0.0
    %112 = vmatpush1.msra.mxu0 0.0
    %113 = vmatprep.subr.mxu0 0.0
    %114 = vmatpush1.msra.mxu0 0.0
    %115 = vmatprep.subr.mxu0 0.0
    %116 = vmatpush1.msra.mxu0 0.0
    %117 = vmatprep.subr.mxu0 0.0
    %118 = vmatpush1.msra.mxu0 0.0
    %119 = vmatprep.subr.mxu0 0.0
    %120 = vmatpush1.msra.mxu0 0.0
    %121 = vmatprep.subr.mxu0 0.0
    %122 = vmatpush1.msra.mxu0 0.0
    %123 = vmatprep.subr.mxu0 0.0
    %124 = vmatpush1.msra.mxu0 0.0
    %125 = vmatprep.subr.mxu0 0.0
    %126 = vmatpush1.msra.mxu0 0.0
    %127 = vmatprep.subr.mxu0 0.0
    %128 = vmatpush1.msra.mxu0 0.0
    %129 = vmatprep.subr.mxu0 0.0
    %130 = vmatpush1.msra.mxu0 0.0
    %131 = vmatprep.subr.mxu0 0.0
    %132 = vmatpush1.msra.mxu0 0.0
    %133 = vmatprep.subr.mxu0 0.0
    %134 = vmatpush1.msra.mxu0 0.0
    %135 = vmatprep.subr.mxu0 0.0
    %136 = vmatpush1.msra.mxu0 0.0
    %137 = vmatprep.subr.mxu0 0.0
    %138 = vmatpush1.msra.mxu0 0.0
    %139 = vmatprep.subr.mxu0 0.0
    %140 = vmatpush1.msra.mxu0 0.0
    %141 = vmatprep.subr.mxu0 0.0
    %142 = vmatpush1.msra.mxu0 0.0
    %143 = vmatprep.mubr.f32.mxu0 0.0
    %v144 = vand.u32 %v72, 4294901760
    %v145 = vsub.f32 %v72, %v144
    %v146 = vand.u32 %v145, 4294901760
    %v147 = vsub.f32 %v145, %v146
    %v148 = vand.u32 %v147, 4294901760
    %149 = vmatmul.mubr.f32.gmra.mrb[0].mxu0 %v148
    %v150 = vpop.f32.mrb[0].mxu0
    %v151 = vadd.f32 0.0, %v150
    %v152 = vpop.f32.mrb[0].mxu0
    %153 = vmatprep.mubr.f32.mxu0 0.0
    %v154 = vand.u32 %v75, 4294901760
    %v155 = vsub.f32 %v75, %v154
    %v156 = vand.u32 %v155, 4294901760
    %v157 = vsub.f32 %v155, %v156
    %v158 = vand.u32 %v157, 4294901760
    %159 = vmatmul.mubr.f32.gmra.mrb[0].mxu0 %v158
    %v160 = vpop.f32.mrb[0].mxu0
    %v161 = vadd.f32 0.0, %v160
    %v162 = vpop.f32.mrb[0].mxu0
    %163 = vdwg.mxu0
    %164 = vmatprep.subr.mxu0 0.0
    %v165 = vand.u32 %v66, 4294901760
    %v166 = vsub.f32 %v66, %v165
    %v167 = vand.u32 %v166, 4294901760
    %v168 = vsub.f32 %v166, %v167
    %v169 = vand.u32 %v168, 4294901760
    %170 = vmatpush1.msra.mxu0 %v169
    %171 = vmatprep.subr.mxu0 0.0
    %v172 = vand.u32 %v67, 4294901760
    %v173 = vsub.f32 %v67, %v172
    %v174 = vand.u32 %v173, 4294901760
    %v175 = vsub.f32 %v173, %v174
    %v176 = vand.u32 %v175, 4294901760
    %177 = vmatpush1.msra.mxu0 %v176
    %178 = vmatprep.subr.mxu0 0.0
    %179 = vmatpush1.msra.mxu0 0.0
    %180 = vmatprep.subr.mxu0 0.0
    %181 = vmatpush1.msra.mxu0 0.0
    %182 = vmatprep.subr.mxu0 0.0
    %183 = vmatpush1.msra.mxu0 0.0
    %184 = vmatprep.subr.mxu0 0.0
    %185 = vmatpush1.msra.mxu0 0.0
    %186 = vmatprep.subr.mxu0 0.0
    %187 = vmatpush1.msra.mxu0 0.0
    %188 = vmatprep.subr.mxu0 0.0
    %189 = vmatpush1.msra.mxu0 0.0
    %190 = vmatprep.subr.mxu0 0.0
    %191 = vmatpush1.msra.mxu0 0.0
    %192 = vmatprep.subr.mxu0 0.0
    %193 = vmatpush1.msra.mxu0 0.0
    %194 = vmatprep.subr.mxu0 0.0
    %195 = vmatpush1.msra.mxu0 0.0
    %196 = vmatprep.subr.mxu0 0.0
    %197 = vmatpush1.msra.mxu0 0.0
    %198 = vmatprep.subr.mxu0 0.0
    %199 = vmatpush1.msra.mxu0 0.0
    %200 = vmatprep.subr.mxu0 0.0
    %201 = vmatpush1.msra.mxu0 0.0
    %202 = vmatprep.subr.mxu0 0.0
    %203 = vmatpush1.msra.mxu0 0.0
    %204 = vmatprep.subr.mxu0 0.0
    %205 = vmatpush1.msra.mxu0 0.0
    %206 = vmatprep.subr.mxu0 0.0
    %207 = vmatpush1.msra.mxu0 0.0
    %208 = vmatprep.subr.mxu0 0.0
    %209 = vmatpush1.msra.mxu0 0.0
    %210 = vmatprep.subr.mxu0 0.0
    %211 = vmatpush1.msra.mxu0 0.0
    %212 = vmatprep.subr.mxu0 0.0
    %213 = vmatpush1.msra.mxu0 0.0
    %214 = vmatprep.subr.mxu0 0.0
    %215 = vmatpush1.msra.mxu0 0.0
    %216 = vmatprep.subr.mxu0 0.0
    %217 = vmatpush1.msra.mxu0 0.0
    %218 = vmatprep.subr.mxu0 0.0
    %219 = vmatpush1.msra.mxu0 0.0
    %220 = vmatprep.subr.mxu0 0.0
    %221 = vmatpush1.msra.mxu0 0.0
    %222 = vmatprep.subr.mxu0 0.0
    %223 = vmatpush1.msra.mxu0 0.0
    %224 = vmatprep.subr.mxu0 0.0
    %225 = vmatpush1.msra.mxu0 0.0
    %226 = vmatprep.subr.mxu0 0.0
    %227 = vmatpush1.msra.mxu0 0.0
    %228 = vmatprep.subr.mxu0 0.0
    %229 = vmatpush1.msra.mxu0 0.0
    %230 = vmatprep.subr.mxu0 0.0
    %231 = vmatpush1.msra.mxu0 0.0
    %232 = vmatprep.subr.mxu0 0.0
    %233 = vmatpush1.msra.mxu0 0.0
    %234 = vmatprep.subr.mxu0 0.0
    %235 = vmatpush1.msra.mxu0 0.0
    %236 = vmatprep.subr.mxu0 0.0
    %237 = vmatpush1.msra.mxu0 0.0
    %238 = vmatprep.mubr.f32.mxu0 0.0
    %v239 = vand.u32 %v72, 4294901760
    %240 = vmatmul.mubr.f32.gmra.mrb[0].mxu0 %v239
    %v241 = vpop.f32.mrb[0].mxu0
    %v242 = vadd.f32 %v151, %v241
    %v243 = vpop.f32.mrb[0].mxu0
    %244 = vmatprep.mubr.f32.mxu0 0.0
    %v245 = vand.u32 %v75, 4294901760
    %246 = vmatmul.mubr.f32.gmra.mrb[0].mxu0 %v245
    %v247 = vpop.f32.mrb[0].mxu0
    %v248 = vadd.f32 %v161, %v247
    %v249 = vpop.f32.mrb[0].mxu0
    %250 = vdwg.mxu0
    %251 = vmatprep.subr.mxu0 0.0
    %v252 = vand.u32 %v66, 4294901760
    %v253 = vsub.f32 %v66, %v252
    %254 = vmatpush1.msra.mxu0 %v253
    %255 = vmatprep.subr.mxu0 0.0
    %v256 = vand.u32 %v67, 4294901760
    %v257 = vsub.f32 %v67, %v256
    %258 = vmatpush1.msra.mxu0 %v257
    %259 = vmatprep.subr.mxu0 0.0
    %260 = vmatpush1.msra.mxu0 0.0
    %261 = vmatprep.subr.mxu0 0.0
    %262 = vmatpush1.msra.mxu0 0.0
    %263 = vmatprep.subr.mxu0 0.0
    %264 = vmatpush1.msra.mxu0 0.0
    %265 = vmatprep.subr.mxu0 0.0
    %266 = vmatpush1.msra.mxu0 0.0
    %267 = vmatprep.subr.mxu0 0.0
    %268 = vmatpush1.msra.mxu0 0.0
    %269 = vmatprep.subr.mxu0 0.0
    %270 = vmatpush1.msra.mxu0 0.0
    %271 = vmatprep.subr.mxu0 0.0
    %272 = vmatpush1.msra.mxu0 0.0
    %273 = vmatprep.subr.mxu0 0.0
    %274 = vmatpush1.msra.mxu0 0.0
    %275 = vmatprep.subr.mxu0 0.0
    %276 = vmatpush1.msra.mxu0 0.0
    %277 = vmatprep.subr.mxu0 0.0
    %278 = vmatpush1.msra.mxu0 0.0
    %279 = vmatprep.subr.mxu0 0.0
    %280 = vmatpush1.msra.mxu0 0.0
    %281 = vmatprep.subr.mxu0 0.0
    %282 = vmatpush1.msra.mxu0 0.0
    %283 = vmatprep.subr.mxu0 0.0
    %284 = vmatpush1.msra.mxu0 0.0
    %285 = vmatprep.subr.mxu0 0.0
    %286 = vmatpush1.msra.mxu0 0.0
    %287 = vmatprep.subr.mxu0 0.0
    %288 = vmatpush1.msra.mxu0 0.0
    %289 = vmatprep.subr.mxu0 0.0
    %290 = vmatpush1.msra.mxu0 0.0
    %291 = vmatprep.subr.mxu0 0.0
    %292 = vmatpush1.msra.mxu0 0.0
    %293 = vmatprep.subr.mxu0 0.0
    %294 = vmatpush1.msra.mxu0 0.0
    %295 = vmatprep.subr.mxu0 0.0
    %296 = vmatpush1.msra.mxu0 0.0
    %297 = vmatprep.subr.mxu0 0.0
    %298 = vmatpush1.msra.mxu0 0.0
    %299 = vmatprep.subr.mxu0 0.0
    %300 = vmatpush1.msra.mxu0 0.0
    %301 = vmatprep.subr.mxu0 0.0
    %302 = vmatpush1.msra.mxu0 0.0
    %303 = vmatprep.subr.mxu0 0.0
    %304 = vmatpush1.msra.mxu0 0.0
    %305 = vmatprep.subr.mxu0 0.0
    %306 = vmatpush1.msra.mxu0 0.0
    %307 = vmatprep.subr.mxu0 0.0
    %308 = vmatpush1.msra.mxu0 0.0
    %309 = vmatprep.subr.mxu0 0.0
    %310 = vmatpush1.msra.mxu0 0.0
    %311 = vmatprep.subr.mxu0 0.0
    %312 = vmatpush1.msra.mxu0 0.0
    %313 = vmatprep.subr.mxu0 0.0
    %314 = vmatpush1.msra.mxu0 0.0
    %315 = vmatprep.subr.mxu0 0.0
    %316 = vmatpush1.msra.mxu0 0.0
    %317 = vmatprep.subr.mxu0 0.0
    %318 = vmatpush1.msra.mxu0 0.0
    %319 = vmatprep.mubr.f32.mxu0 0.0
    %v320 = vand.u32 %v72, 4294901760
    %v321 = vsub.f32 %v72, %v320
    %322 = vmatmul.mubr.f32.gmra.mrb[0].mxu0 %v321
    %v323 = vpop.f32.mrb[0].mxu0
    %v324 = vadd.f32 %v242, %v323
    %v325 = vpop.f32.mrb[0].mxu0
    %326 = vmatprep.mubr.f32.mxu0 0.0
    %v327 = vand.u32 %v75, 4294901760
    %v328 = vsub.f32 %v75, %v327
    %329 = vmatmul.mubr.f32.gmra.mrb[0].mxu0 %v328
    %v330 = vpop.f32.mrb[0].mxu0
    %v331 = vadd.f32 %v248, %v330
    %v332 = vpop.f32.mrb[0].mxu0
    %333 = vdwg.mxu0
    %334 = vmatprep.subr.mxu0 0.0
    %v335 = vand.u32 %v66, 4294901760
    %336 = vmatpush1.msra.mxu0 %v335
    %337 = vmatprep.subr.mxu0 0.0
    %v338 = vand.u32 %v67, 4294901760
    %339 = vmatpush1.msra.mxu0 %v338
    %340 = vmatprep.subr.mxu0 0.0
    %341 = vmatpush1.msra.mxu0 0.0
    %342 = vmatprep.subr.mxu0 0.0
    %343 = vmatpush1.msra.mxu0 0.0
    %344 = vmatprep.subr.mxu0 0.0
    %345 = vmatpush1.msra.mxu0 0.0
    %346 = vmatprep.subr.mxu0 0.0
    %347 = vmatpush1.msra.mxu0 0.0
    %348 = vmatprep.subr.mxu0 0.0
    %349 = vmatpush1.msra.mxu0 0.0
    %350 = vmatprep.subr.mxu0 0.0
    %351 = vmatpush1.msra.mxu0 0.0
    %352 = vmatprep.subr.mxu0 0.0
    %353 = vmatpush1.msra.mxu0 0.0
    %354 = vmatprep.subr.mxu0 0.0
    %355 = vmatpush1.msra.mxu0 0.0
    %356 = vmatprep.subr.mxu0 0.0
    %357 = vmatpush1.msra.mxu0 0.0
    %358 = vmatprep.subr.mxu0 0.0
    %359 = vmatpush1.msra.mxu0 0.0
    %360 = vmatprep.subr.mxu0 0.0
    %361 = vmatpush1.msra.mxu0 0.0
    %362 = vmatprep.subr.mxu0 0.0
    %363 = vmatpush1.msra.mxu0 0.0
    %364 = vmatprep.subr.mxu0 0.0
    %365 = vmatpush1.msra.mxu0 0.0
    %366 = vmatprep.subr.mxu0 0.0
    %367 = vmatpush1.msra.mxu0 0.0
    %368 = vmatprep.subr.mxu0 0.0
    %369 = vmatpush1.msra.mxu0 0.0
    %370 = vmatprep.subr.mxu0 0.0
    %371 = vmatpush1.msra.mxu0 0.0
    %372 = vmatprep.subr.mxu0 0.0
    %373 = vmatpush1.msra.mxu0 0.0
    %374 = vmatprep.subr.mxu0 0.0
    %375 = vmatpush1.msra.mxu0 0.0
    %376 = vmatprep.subr.mxu0 0.0
    %377 = vmatpush1.msra.mxu0 0.0
    %378 = vmatprep.subr.mxu0 0.0
    %379 = vmatpush1.msra.mxu0 0.0
    %380 = vmatprep.subr.mxu0 0.0
    %381 = vmatpush1.msra.mxu0 0.0
    %382 = vmatprep.subr.mxu0 0.0
    %383 = vmatpush1.msra.mxu0 0.0
    %384 = vmatprep.subr.mxu0 0.0
    %385 = vmatpush1.msra.mxu0 0.0
    %386 = vmatprep.subr.mxu0 0.0
    %387 = vmatpush1.msra.mxu0 0.0
    %388 = vmatprep.subr.mxu0 0.0
    %389 = vmatpush1.msra.mxu0 0.0
    %390 = vmatprep.subr.mxu0 0.0
    %391 = vmatpush1.msra.mxu0 0.0
    %392 = vmatprep.subr.mxu0 0.0
    %393 = vmatpush1.msra.mxu0 0.0
    %394 = vmatprep.subr.mxu0 0.0
    %395 = vmatpush1.msra.mxu0 0.0
    %396 = vmatprep.subr.mxu0 0.0
    %397 = vmatpush1.msra.mxu0 0.0
    %398 = vmatprep.subr.mxu0 0.0
    %399 = vmatpush1.msra.mxu0 0.0
    %400 = vmatprep.mubr.f32.mxu0 0.0
    %v401 = vand.u32 %v72, 4294901760
    %v402 = vsub.f32 %v72, %v401
    %v403 = vand.u32 %v402, 4294901760
    %404 = vmatmul.mubr.f32.gmra.mrb[0].mxu0 %v403
    %v405 = vpop.f32.mrb[0].mxu0
    %v406 = vadd.f32 %v324, %v405
    %v407 = vpop.f32.mrb[0].mxu0
    %408 = vmatprep.mubr.f32.mxu0 0.0
    %v409 = vand.u32 %v75, 4294901760
    %v410 = vsub.f32 %v75, %v409
    %v411 = vand.u32 %v410, 4294901760
    %412 = vmatmul.mubr.f32.gmra.mrb[0].mxu0 %v411
    %v413 = vpop.f32.mrb[0].mxu0
    %v414 = vadd.f32 %v331, %v413
    %v415 = vpop.f32.mrb[0].mxu0
    %416 = vdwg.mxu0
    %417 = vmatprep.subr.mxu0 0.0
    %v418 = vand.u32 %v66, 4294901760
    %v419 = vsub.f32 %v66, %v418
    %v420 = vand.u32 %v419, 4294901760
    %421 = vmatpush1.msra.mxu0 %v420
    %422 = vmatprep.subr.mxu0 0.0
    %v423 = vand.u32 %v67, 4294901760
    %v424 = vsub.f32 %v67, %v423
    %v425 = vand.u32 %v424, 4294901760
    %426 = vmatpush1.msra.mxu0 %v425
    %427 = vmatprep.subr.mxu0 0.0
    %428 = vmatpush1.msra.mxu0 0.0
    %429 = vmatprep.subr.mxu0 0.0
    %430 = vmatpush1.msra.mxu0 0.0
    %431 = vmatprep.subr.mxu0 0.0
    %432 = vmatpush1.msra.mxu0 0.0
    %433 = vmatprep.subr.mxu0 0.0
    %434 = vmatpush1.msra.mxu0 0.0
    %435 = vmatprep.subr.mxu0 0.0
    %436 = vmatpush1.msra.mxu0 0.0
    %437 = vmatprep.subr.mxu0 0.0
    %438 = vmatpush1.msra.mxu0 0.0
    %439 = vmatprep.subr.mxu0 0.0
    %440 = vmatpush1.msra.mxu0 0.0
    %441 = vmatprep.subr.mxu0 0.0
    %442 = vmatpush1.msra.mxu0 0.0
    %443 = vmatprep.subr.mxu0 0.0
    %444 = vmatpush1.msra.mxu0 0.0
    %445 = vmatprep.subr.mxu0 0.0
    %446 = vmatpush1.msra.mxu0 0.0
    %447 = vmatprep.subr.mxu0 0.0
    %448 = vmatpush1.msra.mxu0 0.0
    %449 = vmatprep.subr.mxu0 0.0
    %450 = vmatpush1.msra.mxu0 0.0
    %451 = vmatprep.subr.mxu0 0.0
    %452 = vmatpush1.msra.mxu0 0.0
    %453 = vmatprep.subr.mxu0 0.0
    %454 = vmatpush1.msra.mxu0 0.0
    %455 = vmatprep.subr.mxu0 0.0
    %456 = vmatpush1.msra.mxu0 0.0
    %457 = vmatprep.subr.mxu0 0.0
    %458 = vmatpush1.msra.mxu0 0.0
    %459 = vmatprep.subr.mxu0 0.0
    %460 = vmatpush1.msra.mxu0 0.0
    %461 = vmatprep.subr.mxu0 0.0
    %462 = vmatpush1.msra.mxu0 0.0
    %463 = vmatprep.subr.mxu0 0.0
    %464 = vmatpush1.msra.mxu0 0.0
    %465 = vmatprep.subr.mxu0 0.0
    %466 = vmatpush1.msra.mxu0 0.0
    %467 = vmatprep.subr.mxu0 0.0
    %468 = vmatpush1.msra.mxu0 0.0
    %469 = vmatprep.subr.mxu0 0.0
    %470 = vmatpush1.msra.mxu0 0.0
    %471 = vmatprep.subr.mxu0 0.0
    %472 = vmatpush1.msra.mxu0 0.0
    %473 = vmatprep.subr.mxu0 0.0
    %474 = vmatpush1.msra.mxu0 0.0
    %475 = vmatprep.subr.mxu0 0.0
    %476 = vmatpush1.msra.mxu0 0.0
    %477 = vmatprep.subr.mxu0 0.0
    %478 = vmatpush1.msra.mxu0 0.0
    %479 = vmatprep.subr.mxu0 0.0
    %480 = vmatpush1.msra.mxu0 0.0
    %481 = vmatprep.subr.mxu0 0.0
    %482 = vmatpush1.msra.mxu0 0.0
    %483 = vmatprep.subr.mxu0 0.0
    %484 = vmatpush1.msra.mxu0 0.0
    %485 = vmatprep.subr.mxu0 0.0
    %486 = vmatpush1.msra.mxu0 0.0
    %487 = vmatprep.mubr.f32.mxu0 0.0
    %v488 = vand.u32 %v72, 4294901760
    %489 = vmatmul.mubr.f32.gmra.mrb[0].mxu0 %v488
    %v490 = vpop.f32.mrb[0].mxu0
    %v491 = vadd.f32 %v406, %v490
    %v492 = vpop.f32.mrb[0].mxu0
    %493 = vmatprep.mubr.f32.mxu0 0.0
    %v494 = vand.u32 %v75, 4294901760
    %495 = vmatmul.mubr.f32.gmra.mrb[0].mxu0 %v494
    %v496 = vpop.f32.mrb[0].mxu0
    %v497 = vadd.f32 %v414, %v496
    %v498 = vpop.f32.mrb[0].mxu0
    %499 = vdwg.mxu0
    %500 = vmatprep.subr.mxu0 0.0
    %v501 = vand.u32 %v66, 4294901760
    %502 = vmatpush1.msra.mxu0 %v501
    %503 = vmatprep.subr.mxu0 0.0
    %v504 = vand.u32 %v67, 4294901760
    %505 = vmatpush1.msra.mxu0 %v504
    %506 = vmatprep.subr.mxu0 0.0
    %507 = vmatpush1.msra.mxu0 0.0
    %508 = vmatprep.subr.mxu0 0.0
    %509 = vmatpush1.msra.mxu0 0.0
    %510 = vmatprep.subr.mxu0 0.0
    %511 = vmatpush1.msra.mxu0 0.0
    %512 = vmatprep.subr.mxu0 0.0
    %513 = vmatpush1.msra.mxu0 0.0
    %514 = vmatprep.subr.mxu0 0.0
    %515 = vmatpush1.msra.mxu0 0.0
    %516 = vmatprep.subr.mxu0 0.0
    %517 = vmatpush1.msra.mxu0 0.0
    %518 = vmatprep.subr.mxu0 0.0
    %519 = vmatpush1.msra.mxu0 0.0
    %520 = vmatprep.subr.mxu0 0.0
    %521 = vmatpush1.msra.mxu0 0.0
    %522 = vmatprep.subr.mxu0 0.0
    %523 = vmatpush1.msra.mxu0 0.0
    %524 = vmatprep.subr.mxu0 0.0
    %525 = vmatpush1.msra.mxu0 0.0
    %526 = vmatprep.subr.mxu0 0.0
    %527 = vmatpush1.msra.mxu0 0.0
    %528 = vmatprep.subr.mxu0 0.0
    %529 = vmatpush1.msra.mxu0 0.0
    %530 = vmatprep.subr.mxu0 0.0
    %531 = vmatpush1.msra.mxu0 0.0
    %532 = vmatprep.subr.mxu0 0.0
    %533 = vmatpush1.msra.mxu0 0.0
    %534 = vmatprep.subr.mxu0 0.0
    %535 = vmatpush1.msra.mxu0 0.0
    %536 = vmatprep.subr.mxu0 0.0
    %537 = vmatpush1.msra.mxu0 0.0
    %538 = vmatprep.subr.mxu0 0.0
    %539 = vmatpush1.msra.mxu0 0.0
    %540 = vmatprep.subr.mxu0 0.0
    %541 = vmatpush1.msra.mxu0 0.0
    %542 = vmatprep.subr.mxu0 0.0
    %543 = vmatpush1.msra.mxu0 0.0
    %544 = vmatprep.subr.mxu0 0.0
    %545 = vmatpush1.msra.mxu0 0.0
    %546 = vmatprep.subr.mxu0 0.0
    %547 = vmatpush1.msra.mxu0 0.0
    %548 = vmatprep.subr.mxu0 0.0
    %549 = vmatpush1.msra.mxu0 0.0
    %550 = vmatprep.subr.mxu0 0.0
    %551 = vmatpush1.msra.mxu0 0.0
    %552 = vmatprep.subr.mxu0 0.0
    %553 = vmatpush1.msra.mxu0 0.0
    %554 = vmatprep.subr.mxu0 0.0
    %555 = vmatpush1.msra.mxu0 0.0
    %556 = vmatprep.subr.mxu0 0.0
    %557 = vmatpush1.msra.mxu0 0.0
    %558 = vmatprep.subr.mxu0 0.0
    %559 = vmatpush1.msra.mxu0 0.0
    %560 = vmatprep.subr.mxu0 0.0
    %561 = vmatpush1.msra.mxu0 0.0
    %562 = vmatprep.subr.mxu0 0.0
    %563 = vmatpush1.msra.mxu0 0.0
    %564 = vmatprep.subr.mxu0 0.0
    %565 = vmatpush1.msra.mxu0 0.0
    %566 = vmatprep.mubr.f32.mxu0 0.0
    %v567 = vand.u32 %v72, 4294901760
    %568 = vmatmul.mubr.f32.gmra.mrb[0].mxu0 %v567
    %v569 = vpop.f32.mrb[0].mxu0
    %v570 = vadd.f32 %v491, %v569
    %v571 = vpop.f32.mrb[0].mxu0
    %572 = vmatprep.mubr.f32.mxu0 0.0
    %v573 = vand.u32 %v75, 4294901760
    %574 = vmatmul.mubr.f32.gmra.mrb[0].mxu0 %v573
    %v575 = vpop.f32.mrb[0].mxu0
    %v576 = vadd.f32 %v497, %v575
    %v577 = vpop.f32.mrb[0].mxu0
    %578 = vdwg.mxu0
    %v580 = vsel %vm70, %v64, 0
    %v583 = vsel %vm70, %v65, 0
    %585 = vmatprep.subr.mxu0 0.0
    %v586 = vand.u32 %v68, 4294901760
    %587 = vmatpush1.msra.mxu0 %v586
    %588 = vmatprep.subr.mxu0 0.0
    %v589 = vand.u32 %v69, 4294901760
    %590 = vmatpush1.msra.mxu0 %v589
    %591 = vmatprep.subr.mxu0 0.0
    %592 = vmatpush1.msra.mxu0 0.0
    %593 = vmatprep.subr.mxu0 0.0
    %594 = vmatpush1.msra.mxu0 0.0
    %595 = vmatprep.subr.mxu0 0.0
    %596 = vmatpush1.msra.mxu0 0.0
    %597 = vmatprep.subr.mxu0 0.0
    %598 = vmatpush1.msra.mxu0 0.0
    %599 = vmatprep.subr.mxu0 0.0
    %600 = vmatpush1.msra.mxu0 0.0
    %601 = vmatprep.subr.mxu0 0.0
    %602 = vmatpush1.msra.mxu0 0.0
    %603 = vmatprep.subr.mxu0 0.0
    %604 = vmatpush1.msra.mxu0 0.0
    %605 = vmatprep.subr.mxu0 0.0
    %606 = vmatpush1.msra.mxu0 0.0
    %607 = vmatprep.subr.mxu0 0.0
    %608 = vmatpush1.msra.mxu0 0.0
    %609 = vmatprep.subr.mxu0 0.0
    %610 = vmatpush1.msra.mxu0 0.0
    %611 = vmatprep.subr.mxu0 0.0
    %612 = vmatpush1.msra.mxu0 0.0
    %613 = vmatprep.subr.mxu0 0.0
    %614 = vmatpush1.msra.mxu0 0.0
    %615 = vmatprep.subr.mxu0 0.0
    %616 = vmatpush1.msra.mxu0 0.0
    %617 = vmatprep.subr.mxu0 0.0
    %618 = vmatpush1.msra.mxu0 0.0
    %619 = vmatprep.subr.mxu0 0.0
    %620 = vmatpush1.msra.mxu0 0.0
    %621 = vmatprep.subr.mxu0 0.0
    %622 = vmatpush1.msra.mxu0 0.0
    %623 = vmatprep.subr.mxu0 0.0
    %624 = vmatpush1.msra.mxu0 0.0
    %625 = vmatprep.subr.mxu0 0.0
    %626 = vmatpush1.msra.mxu0 0.0
    %627 = vmatprep.subr.mxu0 0.0
    %628 = vmatpush1.msra.mxu0 0.0
    %629 = vmatprep.subr.mxu0 0.0
    %630 = vmatpush1.msra.mxu0 0.0
    %631 = vmatprep.subr.mxu0 0.0
    %632 = vmatpush1.msra.mxu0 0.0
    %633 = vmatprep.subr.mxu0 0.0
    %634 = vmatpush1.msra.mxu0 0.0
    %635 = vmatprep.subr.mxu0 0.0
    %636 = vmatpush1.msra.mxu0 0.0
    %637 = vmatprep.subr.mxu0 0.0
    %638 = vmatpush1.msra.mxu0 0.0
    %639 = vmatprep.subr.mxu0 0.0
    %640 = vmatpush1.msra.mxu0 0.0
    %641 = vmatprep.subr.mxu0 0.0
    %642 = vmatpush1.msra.mxu0 0.0
    %643 = vmatprep.subr.mxu0 0.0
    %644 = vmatpush1.msra.mxu0 0.0
    %645 = vmatprep.subr.mxu0 0.0
    %646 = vmatpush1.msra.mxu0 0.0
    %647 = vmatprep.subr.mxu0 0.0
    %648 = vmatpush1.msra.mxu0 0.0
    %649 = vmatprep.subr.mxu0 0.0
    %650 = vmatpush1.msra.mxu0 0.0
    %651 = vmatprep.mubr.f32.mxu0 0.0
    %v652 = vand.u32 %v580, 4294901760
    %v653 = vsub.f32 %v580, %v652
    %v654 = vand.u32 %v653, 4294901760
    %v655 = vsub.f32 %v653, %v654
    %v656 = vand.u32 %v655, 4294901760
    %657 = vmatmul.mubr.f32.gmra.mrb[0].mxu0 %v656
    %v658 = vpop.f32.mrb[0].mxu0
    %v659 = vadd.f32 0.0, %v658
    %v660 = vpop.f32.mrb[0].mxu0
    %661 = vmatprep.mubr.f32.mxu0 0.0
    %v662 = vand.u32 %v583, 4294901760
    %v663 = vsub.f32 %v583, %v662
    %v664 = vand.u32 %v663, 4294901760
    %v665 = vsub.f32 %v663, %v664
    %v666 = vand.u32 %v665, 4294901760
    %667 = vmatmul.mubr.f32.gmra.mrb[0].mxu0 %v666
    %v668 = vpop.f32.mrb[0].mxu0
    %v669 = vadd.f32 0.0, %v668
    %v670 = vpop.f32.mrb[0].mxu0
    %671 = vdwg.mxu0
    %672 = vmatprep.subr.mxu0 0.0
    %v673 = vand.u32 %v68, 4294901760
    %v674 = vsub.f32 %v68, %v673
    %v675 = vand.u32 %v674, 4294901760
    %v676 = vsub.f32 %v674, %v675
    %v677 = vand.u32 %v676, 4294901760
    %678 = vmatpush1.msra.mxu0 %v677
    %679 = vmatprep.subr.mxu0 0.0
    %v680 = vand.u32 %v69, 4294901760
    %v681 = vsub.f32 %v69, %v680
    %v682 = vand.u32 %v681, 4294901760
    %v683 = vsub.f32 %v681, %v682
    %v684 = vand.u32 %v683, 4294901760
    %685 = vmatpush1.msra.mxu0 %v684
    %686 = vmatprep.subr.mxu0 0.0
    %687 = vmatpush1.msra.mxu0 0.0
    %688 = vmatprep.subr.mxu0 0.0
    %689 = vmatpush1.msra.mxu0 0.0
    %690 = vmatprep.subr.mxu0 0.0
    %691 = vmatpush1.msra.mxu0 0.0
    %692 = vmatprep.subr.mxu0 0.0
    %693 = vmatpush1.msra.mxu0 0.0
    %694 = vmatprep.subr.mxu0 0.0
    %695 = vmatpush1.msra.mxu0 0.0
    %696 = vmatprep.subr.mxu0 0.0
    %697 = vmatpush1.msra.mxu0 0.0
    %698 = vmatprep.subr.mxu0 0.0
    %699 = vmatpush1.msra.mxu0 0.0
    %700 = vmatprep.subr.mxu0 0.0
    %701 = vmatpush1.msra.mxu0 0.0
    %702 = vmatprep.subr.mxu0 0.0
    %703 = vmatpush1.msra.mxu0 0.0
    %704 = vmatprep.subr.mxu0 0.0
    %705 = vmatpush1.msra.mxu0 0.0
    %706 = vmatprep.subr.mxu0 0.0
    %707 = vmatpush1.msra.mxu0 0.0
    %708 = vmatprep.subr.mxu0 0.0
    %709 = vmatpush1.msra.mxu0 0.0
    %710 = vmatprep.subr.mxu0 0.0
    %711 = vmatpush1.msra.mxu0 0.0
    %712 = vmatprep.subr.mxu0 0.0
    %713 = vmatpush1.msra.mxu0 0.0
    %714 = vmatprep.subr.mxu0 0.0
    %715 = vmatpush1.msra.mxu0 0.0
    %716 = vmatprep.subr.mxu0 0.0
    %717 = vmatpush1.msra.mxu0 0.0
    %718 = vmatprep.subr.mxu0 0.0
    %719 = vmatpush1.msra.mxu0 0.0
    %720 = vmatprep.subr.mxu0 0.0
    %721 = vmatpush1.msra.mxu0 0.0
    %722 = vmatprep.subr.mxu0 0.0
    %723 = vmatpush1.msra.mxu0 0.0
    %724 = vmatprep.subr.mxu0 0.0
    %725 = vmatpush1.msra.mxu0 0.0
    %726 = vmatprep.subr.mxu0 0.0
    %727 = vmatpush1.msra.mxu0 0.0
    %728 = vmatprep.subr.mxu0 0.0
    %729 = vmatpush1.msra.mxu0 0.0
    %730 = vmatprep.subr.mxu0 0.0
    %731 = vmatpush1.msra.mxu0 0.0
    %732 = vmatprep.subr.mxu0 0.0
    %733 = vmatpush1.msra.mxu0 0.0
    %734 = vmatprep.subr.mxu0 0.0
    %735 = vmatpush1.msra.mxu0 0.0
    %736 = vmatprep.subr.mxu0 0.0
    %737 = vmatpush1.msra.mxu0 0.0
    %738 = vmatprep.subr.mxu0 0.0
    %739 = vmatpush1.msra.mxu0 0.0
    %740 = vmatprep.subr.mxu0 0.0
    %741 = vmatpush1.msra.mxu0 0.0
    %742 = vmatprep.subr.mxu0 0.0
    %743 = vmatpush1.msra.mxu0 0.0
    %744 = vmatprep.subr.mxu0 0.0
    %745 = vmatpush1.msra.mxu0 0.0
    %746 = vmatprep.mubr.f32.mxu0 0.0
    %v747 = vand.u32 %v580, 4294901760
    %748 = vmatmul.mubr.f32.gmra.mrb[0].mxu0 %v747
    %v749 = vpop.f32.mrb[0].mxu0
    %v750 = vadd.f32 %v659, %v749
    %v751 = vpop.f32.mrb[0].mxu0
    %752 = vmatprep.mubr.f32.mxu0 0.0
    %v753 = vand.u32 %v583, 4294901760
    %754 = vmatmul.mubr.f32.gmra.mrb[0].mxu0 %v753
    %v755 = vpop.f32.mrb[0].mxu0
    %v756 = vadd.f32 %v669, %v755
    %v757 = vpop.f32.mrb[0].mxu0
    %758 = vdwg.mxu0
    %759 = vmatprep.subr.mxu0 0.0
    %v760 = vand.u32 %v68, 4294901760
    %v761 = vsub.f32 %v68, %v760
    %762 = vmatpush1.msra.mxu0 %v761
    %763 = vmatprep.subr.mxu0 0.0
    %v764 = vand.u32 %v69, 4294901760
    %v765 = vsub.f32 %v69, %v764
    %766 = vmatpush1.msra.mxu0 %v765
    %767 = vmatprep.subr.mxu0 0.0
    %768 = vmatpush1.msra.mxu0 0.0
    %769 = vmatprep.subr.mxu0 0.0
    %770 = vmatpush1.msra.mxu0 0.0
    %771 = vmatprep.subr.mxu0 0.0
    %772 = vmatpush1.msra.mxu0 0.0
    %773 = vmatprep.subr.mxu0 0.0
    %774 = vmatpush1.msra.mxu0 0.0
    %775 = vmatprep.subr.mxu0 0.0
    %776 = vmatpush1.msra.mxu0 0.0
    %777 = vmatprep.subr.mxu0 0.0
    %778 = vmatpush1.msra.mxu0 0.0
    %779 = vmatprep.subr.mxu0 0.0
    %780 = vmatpush1.msra.mxu0 0.0
    %781 = vmatprep.subr.mxu0 0.0
    %782 = vmatpush1.msra.mxu0 0.0
    %783 = vmatprep.subr.mxu0 0.0
    %784 = vmatpush1.msra.mxu0 0.0
    %785 = vmatprep.subr.mxu0 0.0
    %786 = vmatpush1.msra.mxu0 0.0
    %787 = vmatprep.subr.mxu0 0.0
    %788 = vmatpush1.msra.mxu0 0.0
    %789 = vmatprep.subr.mxu0 0.0
    %790 = vmatpush1.msra.mxu0 0.0
    %791 = vmatprep.subr.mxu0 0.0
    %792 = vmatpush1.msra.mxu0 0.0
    %793 = vmatprep.subr.mxu0 0.0
    %794 = vmatpush1.msra.mxu0 0.0
    %795 = vmatprep.subr.mxu0 0.0
    %796 = vmatpush1.msra.mxu0 0.0
    %797 = vmatprep.subr.mxu0 0.0
    %798 = vmatpush1.msra.mxu0 0.0
    %799 = vmatprep.subr.mxu0 0.0
    %800 = vmatpush1.msra.mxu0 0.0
    %801 = vmatprep.subr.mxu0 0.0
    %802 = vmatpush1.msra.mxu0 0.0
    %803 = vmatprep.subr.mxu0 0.0
    %804 = vmatpush1.msra.mxu0 0.0
    %805 = vmatprep.subr.mxu0 0.0
    %806 = vmatpush1.msra.mxu0 0.0
    %807 = vmatprep.subr.mxu0 0.0
    %808 = vmatpush1.msra.mxu0 0.0
    %809 = vmatprep.subr.mxu0 0.0
    %810 = vmatpush1.msra.mxu0 0.0
    %811 = vmatprep.subr.mxu0 0.0
    %812 = vmatpush1.msra.mxu0 0.0
    %813 = vmatprep.subr.mxu0 0.0
    %814 = vmatpush1.msra.mxu0 0.0
    %815 = vmatprep.subr.mxu0 0.0
    %816 = vmatpush1.msra.mxu0 0.0
    %817 = vmatprep.subr.mxu0 0.0
    %818 = vmatpush1.msra.mxu0 0.0
    %819 = vmatprep.subr.mxu0 0.0
    %820 = vmatpush1.msra.mxu0 0.0
    %821 = vmatprep.subr.mxu0 0.0
    %822 = vmatpush1.msra.mxu0 0.0
    %823 = vmatprep.subr.mxu0 0.0
    %824 = vmatpush1.msra.mxu0 0.0
    %825 = vmatprep.subr.mxu0 0.0
    %826 = vmatpush1.msra.mxu0 0.0
    %827 = vmatprep.mubr.f32.mxu0 0.0
    %v828 = vand.u32 %v580, 4294901760
    %v829 = vsub.f32 %v580, %v828
    %830 = vmatmul.mubr.f32.gmra.mrb[0].mxu0 %v829
    %v831 = vpop.f32.mrb[0].mxu0
    %v832 = vadd.f32 %v750, %v831
    %v833 = vpop.f32.mrb[0].mxu0
    %834 = vmatprep.mubr.f32.mxu0 0.0
    %v835 = vand.u32 %v583, 4294901760
    %v836 = vsub.f32 %v583, %v835
    %837 = vmatmul.mubr.f32.gmra.mrb[0].mxu0 %v836
    %v838 = vpop.f32.mrb[0].mxu0
    %v839 = vadd.f32 %v756, %v838
    %v840 = vpop.f32.mrb[0].mxu0
    %841 = vdwg.mxu0
    %842 = vmatprep.subr.mxu0 0.0
    %v843 = vand.u32 %v68, 4294901760
    %844 = vmatpush1.msra.mxu0 %v843
    %845 = vmatprep.subr.mxu0 0.0
    %v846 = vand.u32 %v69, 4294901760
    %847 = vmatpush1.msra.mxu0 %v846
    %848 = vmatprep.subr.mxu0 0.0
    %849 = vmatpush1.msra.mxu0 0.0
    %850 = vmatprep.subr.mxu0 0.0
    %851 = vmatpush1.msra.mxu0 0.0
    %852 = vmatprep.subr.mxu0 0.0
    %853 = vmatpush1.msra.mxu0 0.0
    %854 = vmatprep.subr.mxu0 0.0
    %855 = vmatpush1.msra.mxu0 0.0
    %856 = vmatprep.subr.mxu0 0.0
    %857 = vmatpush1.msra.mxu0 0.0
    %858 = vmatprep.subr.mxu0 0.0
    %859 = vmatpush1.msra.mxu0 0.0
    %860 = vmatprep.subr.mxu0 0.0
    %861 = vmatpush1.msra.mxu0 0.0
    %862 = vmatprep.subr.mxu0 0.0
    %863 = vmatpush1.msra.mxu0 0.0
    %864 = vmatprep.subr.mxu0 0.0
    %865 = vmatpush1.msra.mxu0 0.0
    %866 = vmatprep.subr.mxu0 0.0
    %867 = vmatpush1.msra.mxu0 0.0
    %868 = vmatprep.subr.mxu0 0.0
    %869 = vmatpush1.msra.mxu0 0.0
    %870 = vmatprep.subr.mxu0 0.0
    %871 = vmatpush1.msra.mxu0 0.0
    %872 = vmatprep.subr.mxu0 0.0
    %873 = vmatpush1.msra.mxu0 0.0
    %874 = vmatprep.subr.mxu0 0.0
    %875 = vmatpush1.msra.mxu0 0.0
    %876 = vmatprep.subr.mxu0 0.0
    %877 = vmatpush1.msra.mxu0 0.0
    %878 = vmatprep.subr.mxu0 0.0
    %879 = vmatpush1.msra.mxu0 0.0
    %880 = vmatprep.subr.mxu0 0.0
    %881 = vmatpush1.msra.mxu0 0.0
    %882 = vmatprep.subr.mxu0 0.0
    %883 = vmatpush1.msra.mxu0 0.0
    %884 = vmatprep.subr.mxu0 0.0
    %885 = vmatpush1.msra.mxu0 0.0
    %886 = vmatprep.subr.mxu0 0.0
    %887 = vmatpush1.msra.mxu0 0.0
    %888 = vmatprep.subr.mxu0 0.0
    %889 = vmatpush1.msra.mxu0 0.0
    %890 = vmatprep.subr.mxu0 0.0
    %891 = vmatpush1.msra.mxu0 0.0
    %892 = vmatprep.subr.mxu0 0.0
    %893 = vmatpush1.msra.mxu0 0.0
    %894 = vmatprep.subr.mxu0 0.0
    %895 = vmatpush1.msra.mxu0 0.0
    %896 = vmatprep.subr.mxu0 0.0
    %897 = vmatpush1.msra.mxu0 0.0
    %898 = vmatprep.subr.mxu0 0.0
    %899 = vmatpush1.msra.mxu0 0.0
    %900 = vmatprep.subr.mxu0 0.0
    %901 = vmatpush1.msra.mxu0 0.0
    %902 = vmatprep.subr.mxu0 0.0
    %903 = vmatpush1.msra.mxu0 0.0
    %904 = vmatprep.subr.mxu0 0.0
    %905 = vmatpush1.msra.mxu0 0.0
    %906 = vmatprep.subr.mxu0 0.0
    %907 = vmatpush1.msra.mxu0 0.0
    %908 = vmatprep.mubr.f32.mxu0 0.0
    %v909 = vand.u32 %v580, 4294901760
    %v910 = vsub.f32 %v580, %v909
    %v911 = vand.u32 %v910, 4294901760
    %912 = vmatmul.mubr.f32.gmra.mrb[0].mxu0 %v911
    %v913 = vpop.f32.mrb[0].mxu0
    %v914 = vadd.f32 %v832, %v913
    %v915 = vpop.f32.mrb[0].mxu0
    %916 = vmatprep.mubr.f32.mxu0 0.0
    %v917 = vand.u32 %v583, 4294901760
    %v918 = vsub.f32 %v583, %v917
    %v919 = vand.u32 %v918, 4294901760
    %920 = vmatmul.mubr.f32.gmra.mrb[0].mxu0 %v919
    %v921 = vpop.f32.mrb[0].mxu0
    %v922 = vadd.f32 %v839, %v921
    %v923 = vpop.f32.mrb[0].mxu0
    %924 = vdwg.mxu0
    %925 = vmatprep.subr.mxu0 0.0
    %v926 = vand.u32 %v68, 4294901760
    %v927 = vsub.f32 %v68, %v926
    %v928 = vand.u32 %v927, 4294901760
    %929 = vmatpush1.msra.mxu0 %v928
    %930 = vmatprep.subr.mxu0 0.0
    %v931 = vand.u32 %v69, 4294901760
    %v932 = vsub.f32 %v69, %v931
    %v933 = vand.u32 %v932, 4294901760
    %934 = vmatpush1.msra.mxu0 %v933
    %935 = vmatprep.subr.mxu0 0.0
    %936 = vmatpush1.msra.mxu0 0.0
    %937 = vmatprep.subr.mxu0 0.0
    %938 = vmatpush1.msra.mxu0 0.0
    %939 = vmatprep.subr.mxu0 0.0
    %940 = vmatpush1.msra.mxu0 0.0
    %941 = vmatprep.subr.mxu0 0.0
    %942 = vmatpush1.msra.mxu0 0.0
    %943 = vmatprep.subr.mxu0 0.0
    %944 = vmatpush1.msra.mxu0 0.0
    %945 = vmatprep.subr.mxu0 0.0
    %946 = vmatpush1.msra.mxu0 0.0
    %947 = vmatprep.subr.mxu0 0.0
    %948 = vmatpush1.msra.mxu0 0.0
    %949 = vmatprep.subr.mxu0 0.0
    %950 = vmatpush1.msra.mxu0 0.0
    %951 = vmatprep.subr.mxu0 0.0
    %952 = vmatpush1.msra.mxu0 0.0
    %953 = vmatprep.subr.mxu0 0.0
    %954 = vmatpush1.msra.mxu0 0.0
    %955 = vmatprep.subr.mxu0 0.0
    %956 = vmatpush1.msra.mxu0 0.0
    %957 = vmatprep.subr.mxu0 0.0
    %958 = vmatpush1.msra.mxu0 0.0
    %959 = vmatprep.subr.mxu0 0.0
    %960 = vmatpush1.msra.mxu0 0.0
    %961 = vmatprep.subr.mxu0 0.0
    %962 = vmatpush1.msra.mxu0 0.0
    %963 = vmatprep.subr.mxu0 0.0
    %964 = vmatpush1.msra.mxu0 0.0
    %965 = vmatprep.subr.mxu0 0.0
    %966 = vmatpush1.msra.mxu0 0.0
    %967 = vmatprep.subr.mxu0 0.0
    %968 = vmatpush1.msra.mxu0 0.0
    %969 = vmatprep.subr.mxu0 0.0
    %970 = vmatpush1.msra.mxu0 0.0
    %971 = vmatprep.subr.mxu0 0.0
    %972 = vmatpush1.msra.mxu0 0.0
    %973 = vmatprep.subr.mxu0 0.0
    %974 = vmatpush1.msra.mxu0 0.0
    %975 = vmatprep.subr.mxu0 0.0
    %976 = vmatpush1.msra.mxu0 0.0
    %977 = vmatprep.subr.mxu0 0.0
    %978 = vmatpush1.msra.mxu0 0.0
    %979 = vmatprep.subr.mxu0 0.0
    %980 = vmatpush1.msra.mxu0 0.0
    %981 = vmatprep.subr.mxu0 0.0
    %982 = vmatpush1.msra.mxu0 0.0
    %983 = vmatprep.subr.mxu0 0.0
    %984 = vmatpush1.msra.mxu0 0.0
    %985 = vmatprep.subr.mxu0 0.0
    %986 = vmatpush1.msra.mxu0 0.0
    %987 = vmatprep.subr.mxu0 0.0
    %988 = vmatpush1.msra.mxu0 0.0
    %989 = vmatprep.subr.mxu0 0.0
    %990 = vmatpush1.msra.mxu0 0.0
    %991 = vmatprep.subr.mxu0 0.0
    %992 = vmatpush1.msra.mxu0 0.0
    %993 = vmatprep.subr.mxu0 0.0
    %994 = vmatpush1.msra.mxu0 0.0
    %995 = vmatprep.mubr.f32.mxu0 0.0
    %v996 = vand.u32 %v580, 4294901760
    %997 = vmatmul.mubr.f32.gmra.mrb[0].mxu0 %v996
    %v998 = vpop.f32.mrb[0].mxu0
    %v999 = vadd.f32 %v914, %v998
    %v1000 = vpop.f32.mrb[0].mxu0
    %1001 = vmatprep.mubr.f32.mxu0 0.0
    %v1002 = vand.u32 %v583, 4294901760
    %1003 = vmatmul.mubr.f32.gmra.mrb[0].mxu0 %v1002
    %v1004 = vpop.f32.mrb[0].mxu0
    %v1005 = vadd.f32 %v922, %v1004
    %v1006 = vpop.f32.mrb[0].mxu0
    %1007 = vdwg.mxu0
    %1008 = vmatprep.subr.mxu0 0.0
    %v1009 = vand.u32 %v68, 4294901760
    %1010 = vmatpush1.msra.mxu0 %v1009
    %1011 = vmatprep.subr.mxu0 0.0
    %v1012 = vand.u32 %v69, 4294901760
    %1013 = vmatpush1.msra.mxu0 %v1012
    %1014 = vmatprep.subr.mxu0 0.0
    %1015 = vmatpush1.msra.mxu0 0.0
    %1016 = vmatprep.subr.mxu0 0.0
    %1017 = vmatpush1.msra.mxu0 0.0
    %1018 = vmatprep.subr.mxu0 0.0
    %1019 = vmatpush1.msra.mxu0 0.0
    %1020 = vmatprep.subr.mxu0 0.0
    %1021 = vmatpush1.msra.mxu0 0.0
    %1022 = vmatprep.subr.mxu0 0.0
    %1023 = vmatpush1.msra.mxu0 0.0
    %1024 = vmatprep.subr.mxu0 0.0
    %1025 = vmatpush1.msra.mxu0 0.0
    %1026 = vmatprep.subr.mxu0 0.0
    %1027 = vmatpush1.msra.mxu0 0.0
    %1028 = vmatprep.subr.mxu0 0.0
    %1029 = vmatpush1.msra.mxu0 0.0
    %1030 = vmatprep.subr.mxu0 0.0
    %1031 = vmatpush1.msra.mxu0 0.0
    %1032 = vmatprep.subr.mxu0 0.0
    %1033 = vmatpush1.msra.mxu0 0.0
    %1034 = vmatprep.subr.mxu0 0.0
    %1035 = vmatpush1.msra.mxu0 0.0
    %1036 = vmatprep.subr.mxu0 0.0
    %1037 = vmatpush1.msra.mxu0 0.0
    %1038 = vmatprep.subr.mxu0 0.0
    %1039 = vmatpush1.msra.mxu0 0.0
    %1040 = vmatprep.subr.mxu0 0.0
    %1041 = vmatpush1.msra.mxu0 0.0
    %1042 = vmatprep.subr.mxu0 0.0
    %1043 = vmatpush1.msra.mxu0 0.0
    %1044 = vmatprep.subr.mxu0 0.0
    %1045 = vmatpush1.msra.mxu0 0.0
    %1046 = vmatprep.subr.mxu0 0.0
    %1047 = vmatpush1.msra.mxu0 0.0
    %1048 = vmatprep.subr.mxu0 0.0
    %1049 = vmatpush1.msra.mxu0 0.0
    %1050 = vmatprep.subr.mxu0 0.0
    %1051 = vmatpush1.msra.mxu0 0.0
    %1052 = vmatprep.subr.mxu0 0.0
    %1053 = vmatpush1.msra.mxu0 0.0
    %1054 = vmatprep.subr.mxu0 0.0
    %1055 = vmatpush1.msra.mxu0 0.0
    %1056 = vmatprep.subr.mxu0 0.0
    %1057 = vmatpush1.msra.mxu0 0.0
    %1058 = vmatprep.subr.mxu0 0.0
    %1059 = vmatpush1.msra.mxu0 0.0
    %1060 = vmatprep.subr.mxu0 0.0
    %1061 = vmatpush1.msra.mxu0 0.0
    %1062 = vmatprep.subr.mxu0 0.0
    %1063 = vmatpush1.msra.mxu0 0.0
    %1064 = vmatprep.subr.mxu0 0.0
    %1065 = vmatpush1.msra.mxu0 0.0
    %1066 = vmatprep.subr.mxu0 0.0
    %1067 = vmatpush1.msra.mxu0 0.0
    %1068 = vmatprep.subr.mxu0 0.0
    %1069 = vmatpush1.msra.mxu0 0.0
    %1070 = vmatprep.subr.mxu0 0.0
    %1071 = vmatpush1.msra.mxu0 0.0
    %1072 = vmatprep.subr.mxu0 0.0
    %1073 = vmatpush1.msra.mxu0 0.0
    %1074 = vmatprep.mubr.f32.mxu0 0.0
    %v1075 = vand.u32 %v580, 4294901760
    %1076 = vmatmul.mubr.f32.gmra.mrb[0].mxu0 %v1075
    %v1077 = vpop.f32.mrb[0].mxu0
    %v1078 = vadd.f32 %v999, %v1077
    %v1079 = vpop.f32.mrb[0].mxu0
    %1080 = vmatprep.mubr.f32.mxu0 0.0
    %v1081 = vand.u32 %v583, 4294901760
    %1082 = vmatmul.mubr.f32.gmra.mrb[0].mxu0 %v1081
    %v1083 = vpop.f32.mrb[0].mxu0
    %v1084 = vadd.f32 %v1005, %v1083
    %v1085 = vpop.f32.mrb[0].mxu0
    %1086 = vdwg.mxu0
    %v1087 = vlaneseq
    %v1088 = vshrl.u32 %v1087, 7
    %v1089 = vsub.s32 0, %v1088
    %v1090 = vrot.slane %v570, %v1089
    %v1091 = vlaneseq
    %v1092 = vshrl.u32 %v1091, 7
    %v1093 = vsub.s32 0, %v1092
    %v1094 = vrot.slane %v1078, %v1093
    %1095 = vst [vmem:[#allocation2] sm:$0xff] %v1090
    %1096 = vst [vmem:[#allocation2 + $0x10] sm:$0xff] %v1094
    %1097 = vst [vmem:[#allocation2 + $0x8] sm:$0xff] %v576
    %1098 = vst [vmem:[#allocation2 + $0x18] sm:$0xff] %v1084
    // Predicated region
    $region10: #{tpu_custom_call.1} parent=1 // pred_check
      _
    $region11: #{tpu_custom_call.1} parent=1 // pred_check_branch
      %1100 = sbr.rel (0) target = $region13
    $region12: #{tpu_custom_call.1} parent=1 // pred_region
      %s1102 = ssub.s32 512, 512
      %1103 = vsyncadd [#allocation3], %s1102
      %s1104 = sshll.u32 [#allocation2], 4
      %s1105 = int_to_ptr.vmem [resolvable:$true] %s1104
      %1110 = dma.vmem_to_hbm [thread:$0]  %s1105, 512, %s2, [#allocation3], 256, 256, 16
    $region13: #{tpu_custom_call.1} parent=1 // pred_fallthru
      _
    // Predicated region
    $region14: #{tpu_custom_call.1} parent=1 // pred_check
      _
    $region15: #{tpu_custom_call.1} parent=1 // pred_check_branch
      %1112 = sbr.rel (0) target = $region17
    $region16: #{tpu_custom_call.1} parent=1 // pred_region
      %1113 = dma.done [#allocation3], 512
    $region17: #{tpu_custom_call.1} parent=1 // pred_fallthru
      _
    %1114 = vsyncpa [#allocation3], 1

</llo_original>
